<compile_context>
chip_gen: v7x
topology: tpu7x:2x2x1
jax: 0.10.0
libtpu: 0.0.40
codegen_flags: <defaults>
</compile_context>

<pallas_src>
import math
import functools

import jax
import jax.numpy as jnp
from jax.experimental import pallas as pl
from jax.experimental.pallas import tpu as pltpu


# ----------------------------- hardware-aware knobs ------------------------------

@functools.lru_cache(maxsize=1)
def _vmem_limit_bytes():
    """Generation-aware scoped VMEM limit: headroom on v7x (64 MiB physical per
    TensorCore), most of the 128 MiB on v5e/v6e."""
    cap = 128 * 1024 * 1024
    try:
        info = pltpu.get_tpu_info()
        for attr in ("vmem_capacity_bytes", "vmem_size_bytes", "vmem_bytes"):
            v = getattr(info, attr, None)
            if v:
                cap = int(v)
                break
    except Exception:
        pass
    if cap <= 64 * 1024 * 1024:          # v7x
        return 48 * 1024 * 1024
    return 96 * 1024 * 1024              # v5e / v6e


def _cparams(*sem):
    return pltpu.CompilerParams(dimension_semantics=tuple(sem),
                                vmem_limit_bytes=_vmem_limit_bytes())


_SINGLE_BUFFER_OK = None


def _probe_single_buffer():
    """Runtime probe: is pipeline_mode=pl.Buffered(1) usable on this JAX/TPU?"""
    try:
        def _copy(x_ref, o_ref):
            o_ref[...] = x_ref[...]
        spec = pl.BlockSpec((8, 128), lambda i: (0, 0), pipeline_mode=pl.Buffered(1))
        out = pl.pallas_call(
            _copy, out_shape=jax.ShapeDtypeStruct((8, 128), jnp.float32),
            grid=(2,), in_specs=[spec],
            out_specs=pl.BlockSpec((8, 128), lambda i: (0, 0)),
        )(jnp.zeros((8, 128), jnp.float32))
        jax.block_until_ready(out)
        return True
    except Exception:
        return False


def _wspec(shape, index_map):
    """BlockSpec for weights whose block index is constant over the grid:
    single-buffer them (halves resident weight VMEM, matters most on v7x)."""
    global _SINGLE_BUFFER_OK
    if _SINGLE_BUFFER_OK is None:
        _SINGLE_BUFFER_OK = _probe_single_buffer()
    if _SINGLE_BUFFER_OK:
        return pl.BlockSpec(shape, index_map, pipeline_mode=pl.Buffered(1))
    return pl.BlockSpec(shape, index_map)


def _tile(dim, max_tile, align):
    """Largest divisor of `dim` that is <= max_tile and a multiple of `align`,
    falling back to `dim` (full extent) if none exists."""
    if dim <= max_tile:
        return dim
    t = (max_tile // align) * align
    while t >= align:
        if dim % t == 0:
            return t
        t -= align
    return dim


def _seq_batch_tile(bs, n1, n2):
    """# sequences per MHA grid step: aim for >=256 GEMM rows while keeping the
    per-head (bt, n1, n2) f32 score block modest."""
    bt = min(bs, max(1, 256 // max(n1, 1)))
    while bs % bt:
        bt -= 1
    while bt > 1 and bt * n1 * n2 * 4 > 4 * 1024 * 1024:
        bt -= 1
        while bs % bt:
            bt -= 1
    return bt


# ----------------------------- math helpers ------------------------------

def _layernorm_f32(x_f32, g, b, eps=1e-5):
    mu = jnp.mean(x_f32, axis=-1, keepdims=True)
    var = jnp.mean(jnp.square(x_f32 - mu), axis=-1, keepdims=True)
    return (x_f32 - mu) * jax.lax.rsqrt(var + eps) * g + b


_NEG = -1e30  # large finite negative for masking (avoids -inf NaN pitfalls)


# ----------------------------- Pallas kernels ------------------------------

def _linear_kernel(x_ref, w_ref, b_ref, o_ref, *, relu):
    y = jnp.dot(x_ref[...], w_ref[...],
                preferred_element_type=jnp.float32) + b_ref[...]
    if relu:
        y = jnp.maximum(y, 0.0)
    o_ref[...] = y.astype(o_ref.dtype)


def _attend_and_project(q2, k2, v2, wo_ref, *, h, d_k, bt, n1, n2, mask):
    """q2: (bt*n1, h*d_k) f32; k2/v2: (bt*n2, h*d_k) f32 -> (bt*n1, h*d_k) f32.
    Heads are a small unrolled loop; the Bt batch runs through one batched einsum
    per head; per-head outputs are accumulated directly through the per-head Wo
    rows (no lane-dim concat; 1/sqrt(d_k) is pre-folded into the Q projection)."""
    d = h * d_k
    q3 = q2.reshape(bt, n1, d).astype(jnp.bfloat16)
    k3 = k2.reshape(bt, n2, d).astype(jnp.bfloat16)
    v3 = v2.reshape(bt, n2, d).astype(jnp.bfloat16)
    acc = jnp.zeros((bt * n1, d), jnp.float32)
    for head in range(h):
        sl = slice(head * d_k, (head + 1) * d_k)
        s = jnp.einsum('bqd,bkd->bqk', q3[:, :, sl], k3[:, :, sl],
                       preferred_element_type=jnp.float32)
        if mask is not None:
            s = jnp.where(mask, s, _NEG)
        m = jnp.max(s, axis=-1, keepdims=True)
        e = jnp.exp(s - m)
        p = e * pl.reciprocal(jnp.sum(e, axis=-1, keepdims=True), approx=True)
        att = jnp.einsum('bqk,bkd->bqd', p.astype(jnp.bfloat16), v3[:, :, sl],
                         preferred_element_type=jnp.float32)
        acc = acc + jnp.dot(att.reshape(bt * n1, d_k).astype(jnp.bfloat16),
                            wo_ref[head], preferred_element_type=jnp.float32)
    return acc


def _self_mha_body(x_ref, lng_ref, lnb_ref, wqkv_ref, bqkv_ref, wo_ref, bo_ref,
                   o_ref, *, h, d_k, bt, mask):
    d = h * d_k
    n = x_ref.shape[1]
    xf = x_ref[...].astype(jnp.float32)                                  # (bt, n, d)
    x2 = xf.reshape(bt * n, d)
    xn = _layernorm_f32(x2, lng_ref[...], lnb_ref[...]).astype(jnp.bfloat16)
    qkv = jnp.dot(xn, wqkv_ref[...],
                  preferred_element_type=jnp.float32) + bqkv_ref[...]    # (bt*n, 3d)
    out = _attend_and_project(qkv[:, :d], qkv[:, d:2 * d], qkv[:, 2 * d:],
                              wo_ref, h=h, d_k=d_k, bt=bt, n1=n, n2=n,
                              mask=mask) + bo_ref[...]
    o_ref[...] = (xf + out.reshape(bt, n, d)).astype(o_ref.dtype)        # residual


def _self_mha_kernel(x_ref, lng_ref, lnb_ref, wqkv_ref, bqkv_ref, wo_ref,
                     bo_ref, o_ref, *, h, d_k, bt):
    _self_mha_body(x_ref, lng_ref, lnb_ref, wqkv_ref, bqkv_ref, wo_ref, bo_ref,
                   o_ref, h=h, d_k=d_k, bt=bt, mask=None)


def _masked_self_mha_kernel(len_ref, x_ref, lng_ref, lnb_ref, wqkv_ref,
                            bqkv_ref, wo_ref, bo_ref, o_ref, *, h, d_k, bt):
    n = x_ref.shape[1]
    b0 = pl.program_id(0)
    row = jax.lax.broadcasted_iota(jnp.int32, (bt, n, n), 1)
    col = jax.lax.broadcasted_iota(jnp.int32, (bt, n, n), 2)
    bidx = jax.lax.broadcasted_iota(jnp.int32, (bt, 1, 1), 0)
    lens = jnp.zeros((bt, 1, 1), jnp.int32)
    for i in range(bt):                                  # bt is a static Python int
        lens = jnp.where(bidx == i, len_ref[b0 * bt + i], lens)
    mask = (col <= row) & (col < lens)                   # causal & key-padding mask
    _self_mha_body(x_ref, lng_ref, lnb_ref, wqkv_ref, bqkv_ref, wo_ref, bo_ref,
                   o_ref, h=h, d_k=d_k, bt=bt, mask=mask)


def _cross_mha_kernel(x_ref, enc_ref, lng_ref, lnb_ref, wq_ref, bq_ref,
                      wkv_ref, bkv_ref, wo_ref, bo_ref, o_ref, *, h, d_k, bt):
    d = h * d_k
    n1 = x_ref.shape[1]
    n2 = enc_ref.shape[1]
    xf = x_ref[...].astype(jnp.float32)
    x2 = xf.reshape(bt * n1, d)
    xn = _layernorm_f32(x2, lng_ref[...], lnb_ref[...]).astype(jnp.bfloat16)
    q = jnp.dot(xn, wq_ref[...],
                preferred_element_type=jnp.float32) + bq_ref[...]        # (bt*n1, d)
    enc2 = enc_ref[...].reshape(bt * n2, d).astype(jnp.bfloat16)
    kv = jnp.dot(enc2, wkv_ref[...],
                 preferred_element_type=jnp.float32) + bkv_ref[...]      # (bt*n2, 2d)
    out = _attend_and_project(q, kv[:, :d], kv[:, d:], wo_ref,
                              h=h, d_k=d_k, bt=bt, n1=n1, n2=n2,
                              mask=None) + bo_ref[...]
    o_ref[...] = (xf + out.reshape(bt, n1, d)).astype(o_ref.dtype)


def _ff_kernel(x_ref, lng_ref, lnb_ref, w1_ref, b1_ref, w2_ref, b2_ref, *rest,
               final_ln):
    if final_ln:
        g2_ref, be2_ref, o_ref = rest
    else:
        (o_ref,) = rest
    xf = x_ref[...].astype(jnp.float32)
    xn = _layernorm_f32(xf, lng_ref[...], lnb_ref[...]).astype(jnp.bfloat16)
    hid = jnp.maximum(
        jnp.dot(xn, w1_ref[...], preferred_element_type=jnp.float32) + b1_ref[...],
        0.0)
    y = jnp.dot(hid.astype(jnp.bfloat16), w2_ref[...],
                preferred_element_type=jnp.float32) + b2_ref[...]
    y = xf + y
    if final_ln:                            # fused encoder final LayerNorm epilogue
        y = _layernorm_f32(y, g2_ref[...], be2_ref[...])
    o_ref[...] = y.astype(o_ref.dtype)


def _classifier_lse_kernel(x_ref, lng_ref, lnb_ref, w_ref, cb_ref, lse_ref,
                           xn_scr, m_scr, l_scr):
    j = pl.program_id(1)

    @pl.when(j == 0)
    def _():
        xf = x_ref[...].astype(jnp.float32)
        xn_scr[...] = _layernorm_f32(xf, lng_ref[...],
                                     lnb_ref[...]).astype(jnp.bfloat16)
        m_scr[...] = jnp.full(m_scr.shape, _NEG, jnp.float32)
        l_scr[...] = jnp.zeros(l_scr.shape, jnp.float32)

    z = jnp.dot(xn_scr[...], w_ref[...],
                preferred_element_type=jnp.float32) + cb_ref[...]         # (tm, tv)
    m_prev = m_scr[...]
    m_new = jnp.maximum(m_prev, jnp.max(z, axis=-1, keepdims=True))
    l_scr[...] = l_scr[...] * jnp.exp(m_prev - m_new) + \
        jnp.sum(jnp.exp(z - m_new), axis=-1, keepdims=True)
    m_scr[...] = m_new

    @pl.when(j == pl.num_programs(1) - 1)
    def _():
        lse_ref[...] = m_scr[...] + jnp.log(l_scr[...])


def _classifier_out_kernel(x_ref, lng_ref, lnb_ref, w_ref, cb_ref, lse_ref,
                           o_ref):
    # Recompute z for this vocab tile and write log-probs directly (no f32
    # logits HBM round trip).
    xf = x_ref[...].astype(jnp.float32)
    xn = _layernorm_f32(xf, lng_ref[...], lnb_ref[...]).astype(jnp.bfloat16)
    z = jnp.dot(xn, w_ref[...],
                preferred_element_type=jnp.float32) + cb_ref[...]
    o_ref[...] = z - lse_ref[...]


# ----------------------------- Pallas wrappers ------------------------------

def pallas_linear(x2d, w, b, relu=False, out_dtype=jnp.bfloat16):
    M, K = x2d.shape
    N = w.shape[1]
    tm = _tile(M, 512, 16)
    tn = _tile(N, 1024, 128)
    return pl.pallas_call(
        functools.partial(_linear_kernel, relu=relu),
        out_shape=jax.ShapeDtypeStruct((M, N), out_dtype),
        grid=(M // tm, N // tn),
        in_specs=[pl.BlockSpec((tm, K), lambda i, j: (i, 0)),
                  pl.BlockSpec((K, tn), lambda i, j: (0, j)),
                  pl.BlockSpec((1, tn), lambda i, j: (0, j))],
        out_specs=pl.BlockSpec((tm, tn), lambda i, j: (i, j)),
        compiler_params=_cparams("parallel", "parallel"),
    )(x2d, w, b.reshape(1, N))


def pallas_self_mha(x, ln, att, h, d_k, lengths=None):
    """LN + fused QKV proj + per-head attention + Wo + residual; Bt sequences per
    grid step so the projection GEMMs see Bt*n rows."""
    bs, n, d = x.shape
    bt = _seq_batch_tile(bs, n, n)
    in_specs = [
        pl.BlockSpec((bt, n, d), lambda b, *_: (b, 0, 0)),     # x
        _wspec((1, d), lambda b, *_: (0, 0)),                  # LN gamma
        _wspec((1, d), lambda b, *_: (0, 0)),                  # LN beta
        _wspec((d, 3 * d), lambda b, *_: (0, 0)),              # Wqkv (scale folded into Q)
        _wspec((1, 3 * d), lambda b, *_: (0, 0)),              # bqkv
        _wspec((h, d_k, d), lambda b, *_: (0, 0, 0)),          # Wo split per head
        _wspec((1, d), lambda b, *_: (0, 0)),                  # bo
    ]
    out_spec = pl.BlockSpec((bt, n, d), lambda b, *_: (b, 0, 0))
    operands = (x, ln["g"].reshape(1, d), ln["b"].reshape(1, d),
                att["wqkv"], att["bqkv"].reshape(1, 3 * d),
                att["wo_h"], att["bo"].reshape(1, d))
    out_shape = jax.ShapeDtypeStruct((bs, n, d), x.dtype)

    if lengths is None:
        return pl.pallas_call(
            functools.partial(_self_mha_kernel, h=h, d_k=d_k, bt=bt),
            out_shape=out_shape,
            grid=(bs // bt,),
            in_specs=in_specs,
            out_specs=out_spec,
            compiler_params=_cparams("parallel"),
        )(*operands)

    # masked (decoder) variant: lengths scalar-prefetched into SMEM; mask built in-kernel
    return pl.pallas_call(
        functools.partial(_masked_self_mha_kernel, h=h, d_k=d_k, bt=bt),
        out_shape=out_shape,
        grid_spec=pltpu.PrefetchScalarGridSpec(
            num_scalar_prefetch=1, grid=(bs // bt,),
            in_specs=in_specs, out_specs=out_spec),
        compiler_params=_cparams("parallel"),
    )(lengths, *operands)


def pallas_cross_mha(x, enc, ln, att, h, d_k):
    """LN(q) + Q proj, fused KV proj of enc_out, attention + Wo + residual."""
    bs, n1, d = x.shape
    n2 = enc.shape[1]
    bt = _seq_batch_tile(bs, n1, n2)
    return pl.pallas_call(
        functools.partial(_cross_mha_kernel, h=h, d_k=d_k, bt=bt),
        out_shape=jax.ShapeDtypeStruct((bs, n1, d), x.dtype),
        grid=(bs // bt,),
        in_specs=[pl.BlockSpec((bt, n1, d), lambda b: (b, 0, 0)),
                  pl.BlockSpec((bt, n2, d), lambda b: (b, 0, 0)),
                  _wspec((1, d), lambda b: (0, 0)),
                  _wspec((1, d), lambda b: (0, 0)),
                  _wspec((d, d), lambda b: (0, 0)),
                  _wspec((1, d), lambda b: (0, 0)),
                  _wspec((d, 2 * d), lambda b: (0, 0)),
                  _wspec((1, 2 * d), lambda b: (0, 0)),
                  _wspec((h, d_k, d), lambda b: (0, 0, 0)),
                  _wspec((1, d), lambda b: (0, 0))],
        out_specs=pl.BlockSpec((bt, n1, d), lambda b: (b, 0, 0)),
        compiler_params=_cparams("parallel"),
    )(x, enc, ln["g"].reshape(1, d), ln["b"].reshape(1, d),
      att["wq"], att["bq"].reshape(1, d),
      att["wkv"], att["bkv"].reshape(1, 2 * d),
      att["wo_h"], att["bo"].reshape(1, d))


def pallas_ff(x, ln, ff, final_ln=None):
    """LN + FF1 + ReLU + FF2 + residual (+ optional fused final LayerNorm),
    tiled over rows with the weights resident."""
    bs, n, d = x.shape
    M = bs * n
    d_ff = ff["w1"].shape[1]
    x2 = x.reshape(M, d)
    tm = _tile(M, 512, 16)
    in_specs = [pl.BlockSpec((tm, d), lambda i: (i, 0)),
                _wspec((1, d), lambda i: (0, 0)),
                _wspec((1, d), lambda i: (0, 0)),
                _wspec((d, d_ff), lambda i: (0, 0)),
                _wspec((1, d_ff), lambda i: (0, 0)),
                _wspec((d_ff, d), lambda i: (0, 0)),
                _wspec((1, d), lambda i: (0, 0))]
    operands = [x2, ln["g"].reshape(1, d), ln["b"].reshape(1, d),
                ff["w1"], ff["b1"].reshape(1, d_ff),
                ff["w2"], ff["b2"].reshape(1, d)]
    if final_ln is not None:
        in_specs += [_wspec((1, d), lambda i: (0, 0)),
                     _wspec((1, d), lambda i: (0, 0))]
        operands += [final_ln["g"].reshape(1, d), final_ln["b"].reshape(1, d)]
    out = pl.pallas_call(
        functools.partial(_ff_kernel, final_ln=final_ln is not None),
        out_shape=jax.ShapeDtypeStruct((M, d), x.dtype),
        grid=(M // tm,),
        in_specs=in_specs,
        out_specs=pl.BlockSpec((tm, d), lambda i: (i, 0)),
        compiler_params=_cparams("parallel"),
    )(*operands)
    return out.reshape(bs, n, d)


def pallas_classifier_logsoftmax(x2d, ln, w, b):
    """Fused final-LN + classifier + log_softmax.  Pass 1 streams the vocab axis
    with an online logsumexp (writes only the (M,1) lse); pass 2 recomputes z per
    vocab tile and writes z - lse directly, so only M*V*4 bytes ever hit HBM."""
    M, d = x2d.shape
    V = w.shape[1]
    generous = _vmem_limit_bytes() >= 96 * 1024 * 1024
    tm = _tile(M, 512 if generous else 256, 16)
    tv = _tile(V, 1024 if generous else 512, 128)
    lng = ln["g"].reshape(1, d)
    lnb = ln["b"].reshape(1, d)
    cb = b.reshape(1, V)

    lse = pl.pallas_call(
        _classifier_lse_kernel,
        out_shape=jax.ShapeDtypeStruct((M, 1), jnp.float32),
        grid=(M // tm, V // tv),
        in_specs=[pl.BlockSpec((tm, d), lambda i, j: (i, 0)),
                  _wspec((1, d), lambda i, j: (0, 0)),
                  _wspec((1, d), lambda i, j: (0, 0)),
                  pl.BlockSpec((d, tv), lambda i, j: (0, j)),
                  pl.BlockSpec((1, tv), lambda i, j: (0, j))],
        out_specs=pl.BlockSpec((tm, 1), lambda i, j: (i, 0)),
        scratch_shapes=[pltpu.VMEM((tm, d), jnp.bfloat16),
                        pltpu.VMEM((tm, 1), jnp.float32),
                        pltpu.VMEM((tm, 1), jnp.float32)],
        compiler_params=_cparams("parallel", "arbitrary"),
    )(x2d, lng, lnb, w, cb)

    return pl.pallas_call(
        _classifier_out_kernel,
        out_shape=jax.ShapeDtypeStruct((M, V), jnp.float32),
        grid=(M // tm, V // tv),
        in_specs=[pl.BlockSpec((tm, d), lambda i, j: (i, 0)),
                  _wspec((1, d), lambda i, j: (0, 0)),
                  _wspec((1, d), lambda i, j: (0, 0)),
                  pl.BlockSpec((d, tv), lambda i, j: (0, j)),
                  pl.BlockSpec((1, tv), lambda i, j: (0, j)),
                  pl.BlockSpec((tm, 1), lambda i, j: (i, 0))],
        out_specs=pl.BlockSpec((tm, tv), lambda i, j: (i, j)),
        compiler_params=_cparams("parallel", "parallel"),
    )(x2d, lng, lnb, w, cb, lse)


# ----------------------------- model forward ------------------------------

def transformer_forward_xe(params, settings, att_feats, captions, lengths):
    d_model = settings["d_model"]
    h = settings["h"]
    d_k = d_model // h
    bs = att_feats.shape[0]

    # ---- _feats_encode: reshape + att_embed (Linear -> ReLU -> Dropout(id)) ----
    feats = att_feats.reshape(bs, -1, att_feats.shape[-1]).astype(jnp.bfloat16)
    n_att = feats.shape[1]
    x = pallas_linear(feats.reshape(bs * n_att, feats.shape[-1]),
                      params["att_embed"]["w"], params["att_embed"]["b"],
                      relu=True).reshape(bs, n_att, d_model)

    # ---- encoder (att_masks is None in forward_xe); final LN fused into last FF ----
    n_enc = len(params["enc_layers"])
    for li, lp in enumerate(params["enc_layers"]):
        x = pallas_self_mha(x, lp["ln"][0], lp["att"], h, d_k, lengths=None)
        x = pallas_ff(x, lp["ln"][1], lp["ff"],
                      final_ln=params["enc_ln"] if li == n_enc - 1 else None)
    enc_out = x

    # ---- _sequence_encode on captions[:, :-1] ----
    cap = captions[:, :-1]
    seq_len = cap.shape[1]
    if isinstance(lengths, (list, tuple)):
        assert seq_len == max(lengths)
    # TODO(synk): word-embedding gather + positional-encoding add stay in XLA
    # (no clean Pallas gather); dropout is identity (eval semantics).
    emb = jnp.take(params["word_embed"], cap, axis=0) * math.sqrt(d_model)
    emb = (emb + params["pe"][None, :seq_len, :]).astype(jnp.bfloat16)
    lengths_arr = jnp.asarray(lengths, dtype=jnp.int32)

    # ---- decoder ----
    y = emb
    for lp in params["dec_layers"]:
        y = pallas_self_mha(y, lp["ln"][0], lp["self_att"], h, d_k,
                            lengths=lengths_arr)
        y = pallas_cross_mha(y, enc_out, lp["ln"][1], lp["cross_att"], h, d_k)
        y = pallas_ff(y, lp["ln"][2], lp["ff"])

    # ---- final LN (fused) + classifier + log_softmax (vocab-streamed, online LSE) ----
    logp = pallas_classifier_logsoftmax(y.reshape(bs * seq_len, d_model),
                                        params["dec_ln"],
                                        params["classifier"]["w"],
                                        params["classifier"]["b"])
    return logp.reshape(bs, seq_len, -1)


# ----------------------------- parameter init ------------------------------

def _init_linear(key, d_in, d_out):
    k1, k2 = jax.random.split(key)
    bound = 1.0 / math.sqrt(d_in)
    w = jax.random.uniform(k1, (d_in, d_out), jnp.float32, -bound, bound)
    b = jax.random.uniform(k2, (d_out,), jnp.float32, -bound, bound)
    return {"w": w.astype(jnp.bfloat16), "b": b}          # bf16 weights, f32 bias


def _init_ln(d):
    return {"g": jnp.ones((d,), jnp.float32), "b": jnp.zeros((d,), jnp.float32)}


def _init_self_mha(key, d, h, d_k):
    ks = jax.random.split(key, 4)
    q, k, v, o = (_init_linear(ks[i], d, d) for i in range(4))
    scale = 1.0 / math.sqrt(d_k)                   # fold 1/sqrt(d_k) into the Q proj
    wq = (q["w"].astype(jnp.float32) * scale).astype(jnp.bfloat16)
    return {"wqkv": jnp.concatenate([wq, k["w"], v["w"]], axis=1),
            "bqkv": jnp.concatenate([q["b"] * scale, k["b"], v["b"]]),
            "wo_h": o["w"].reshape(h, d_k, d),     # Wo rows grouped per head
            "bo": o["b"]}


def _init_cross_mha(key, d, h, d_k):
    ks = jax.random.split(key, 4)
    q, k, v, o = (_init_linear(ks[i], d, d) for i in range(4))
    scale = 1.0 / math.sqrt(d_k)
    return {"wq": (q["w"].astype(jnp.float32) * scale).astype(jnp.bfloat16),
            "bq": q["b"] * scale,
            "wkv": jnp.concatenate([k["w"], v["w"]], axis=1),
            "bkv": jnp.concatenate([k["b"], v["b"]]),
            "wo_h": o["w"].reshape(h, d_k, d),
            "bo": o["b"]}


def _init_ff(key, d_model, d_ff):
    k1, k2 = jax.random.split(key)
    l1 = _init_linear(k1, d_model, d_ff)
    l2 = _init_linear(k2, d_ff, d_model)
    return {"w1": l1["w"], "b1": l1["b"], "w2": l2["w"], "b2": l2["b"]}


def init_params(key, idx2word, settings, pad_id):
    d_model, d_ff = settings["d_model"], settings["d_ff"]
    h = settings["h"]
    d_k = d_model // h
    vocab = len(idx2word)
    keys = jax.random.split(key, 8)

    # word embedding with padding_idx row zeroed
    we = jax.random.normal(keys[0], (vocab, d_model), jnp.float32) * 0.02
    we = we.at[pad_id].set(0.0)

    # sinusoidal positional encoding (interleaved sin/cos like the PyTorch module)
    pos = jnp.arange(settings["max_seq_len"], dtype=jnp.float32)[:, None]
    div = jnp.exp(jnp.arange(0, d_model, 2, dtype=jnp.float32)
                  * (-math.log(10000.0) / d_model))
    ang = pos * div
    pe = jnp.stack([jnp.sin(ang), jnp.cos(ang)], axis=-1).reshape(
        settings["max_seq_len"], d_model)

    enc_keys = jax.random.split(keys[1], settings["N_enc"] * 2)
    enc_layers = []
    for i in range(settings["N_enc"]):
        enc_layers.append({"att": _init_self_mha(enc_keys[2 * i], d_model, h, d_k),
                           "ff": _init_ff(enc_keys[2 * i + 1], d_model, d_ff),
                           "ln": [_init_ln(d_model), _init_ln(d_model)]})

    dec_keys = jax.random.split(keys[2], settings["N_dec"] * 3)
    dec_layers = []
    for i in range(settings["N_dec"]):
        dec_layers.append({"self_att": _init_self_mha(dec_keys[3 * i], d_model, h, d_k),
                           "cross_att": _init_cross_mha(dec_keys[3 * i + 1], d_model, h, d_k),
                           "ff": _init_ff(dec_keys[3 * i + 2], d_model, d_ff),
                           "ln": [_init_ln(d_model), _init_ln(d_model),
                                  _init_ln(d_model)]})

    return {"word_embed": we,
            "pe": pe,
            "att_embed": _init_linear(keys[3], settings["att_feat_dim"], d_model),
            "enc_layers": enc_layers,
            "enc_ln": _init_ln(d_model),
            "dec_layers": dec_layers,
            "dec_ln": _init_ln(d_model),
            "classifier": _init_linear(keys[4], d_model, vocab)}


# ----------------------------- main ------------------------------

if __name__ == "__main__":
    settings = {"d_model": 128, "h": 4, "d_ff": 256, "N_enc": 2, "N_dec": 2,
                "dropout_p": 0.1, "max_seq_len": 16, "att_feat_dim": 64}
    # vocab = 2048 (multiple of 128) so the classifier vocab axis actually streams
    idx2word = ["<PAD>", "<UNK>", "<SOS>", "<EOS>"] + [f"w{i}" for i in range(2044)]
    pad_id = idx2word.index("<PAD>")
    vocab_size = len(idx2word)

    key = jax.random.PRNGKey(0)
    k_params, k_feats, k_caps = jax.random.split(key, 3)

    params = init_params(k_params, idx2word, settings, pad_id)

    bs, n_att = 2, 8
    att_feats = jax.random.normal(k_feats, (bs, n_att, settings["att_feat_dim"]),
                                  jnp.float32)

    lengths = [8, 6]                       # lengths of captions[:, :-1]
    cap_len = max(lengths) + 1             # full caption length (teacher forcing)
    captions = jax.random.randint(k_caps, (bs, cap_len), 4, vocab_size, jnp.int32)
    captions = captions.at[1, lengths[1]:].set(pad_id)

    out = transformer_forward_xe(params, settings, att_feats, captions, lengths)
    out = jax.block_until_ready(out)

    assert out.shape == (bs, max(lengths), vocab_size)
    assert bool(jnp.all(jnp.isfinite(out)))
    # rows are log-probabilities: exp-sum should be ~1
    assert bool(jnp.allclose(jnp.exp(out).sum(-1), 1.0, atol=1e-3))
    # TODO(synk): forward_rl / beam-search sample() use host-side python control
    # flow and are not kernelized; dropout is identity (eval semantics).
    print("KERNEL_OK")
</pallas_src>

<mosaic_0001>
module attributes {stable_mosaic.version = 11 : i64} {
  func.func @_linear_kernel(%arg0: i32, %arg1: i32, %arg2: memref<16x64xbf16, #tpu.memory_space<vmem>>, %arg3: memref<64x128xbf16, #tpu.memory_space<vmem>>, %arg4: memref<1x128xf32, #tpu.memory_space<vmem>>, %arg5: memref<16x128xbf16, #tpu.memory_space<vmem>>) attributes {dimension_semantics = [#tpu.dimension_semantics<parallel>, #tpu.dimension_semantics<parallel>], iteration_bounds = array<i64: 1, 1>, scalar_prefetch = 0 : i64, scratch_operands = 0 : i64, tpu.core_type = #tpu.core_type<tc>, window_params = [{transform_indices = @transform_0, window_bounds = array<i64: 16, 64>}, {transform_indices = @transform_1, window_bounds = array<i64: 64, 128>}, {transform_indices = @transform_2, window_bounds = array<i64: 1, 128>}, {transform_indices = @transform_3, window_bounds = array<i64: 16, 128>}]} {
    %c0 = arith.constant 0 : index
    %c0_0 = arith.constant 0 : index
    %0 = vector.load %arg2[%c0, %c0_0] : memref<16x64xbf16, #tpu.memory_space<vmem>>, vector<16x64xbf16>
    %c0_1 = arith.constant 0 : index
    %c0_2 = arith.constant 0 : index
    %1 = vector.load %arg3[%c0_1, %c0_2] : memref<64x128xbf16, #tpu.memory_space<vmem>>, vector<64x128xbf16>
    %cst = arith.constant dense<0.000000e+00> : vector<16x128xf32>
    %2 = tpu.matmul %0, %1, %cst {dimension_numbers = #tpu.dot_dimension_numbers<[1], [0], [0], [1], [0, 0, 1, 1], [], []>} : vector<16x64xbf16>, vector<64x128xbf16>, vector<16x128xf32> -> vector<16x128xf32>
    %c0_3 = arith.constant 0 : index
    %c0_4 = arith.constant 0 : index
    %3 = vector.load %arg4[%c0_3, %c0_4] : memref<1x128xf32, #tpu.memory_space<vmem>>, vector<1x128xf32>
    %4 = vector.broadcast %3 : vector<1x128xf32> to vector<16x128xf32>
    %5 = arith.addf %2, %4 : vector<16x128xf32>
    %cst_5 = arith.constant 0.000000e+00 : f32
    %6 = vector.broadcast %cst_5 : f32 to vector<16x128xf32>
    %7 = arith.maximumf %5, %6 : vector<16x128xf32>
    %8 = arith.truncf %7 : vector<16x128xf32> to vector<16x128xbf16>
    %c0_6 = arith.constant 0 : index
    %c0_7 = arith.constant 0 : index
    %9 = vector.load %arg5[%c0_6, %c0_7] : memref<16x128xbf16, #tpu.memory_space<vmem>>, vector<16x128xbf16>
    tpu.vector_store %arg5[%c0_6, %c0_7], %8 {strides = array<i32>} : memref<16x128xbf16, #tpu.memory_space<vmem>>, vector<16x128xbf16>,
    return
  }
  func.func @transform_0(%arg0: i32, %arg1: i32) -> (i32, i32) {
    %c0_i32 = arith.constant 0 : i32
    %c0_i32_0 = arith.constant 0 : i32
    return %arg0, %c0_i32 : i32, i32
  }
  func.func @transform_1(%arg0: i32, %arg1: i32) -> (i32, i32) {
    %c0_i32 = arith.constant 0 : i32
    %c0_i32_0 = arith.constant 0 : i32
    return %c0_i32, %arg1 : i32, i32
  }
  func.func @transform_2(%arg0: i32, %arg1: i32) -> (i32, i32) {
    %c0_i32 = arith.constant 0 : i32
    %c0_i32_0 = arith.constant 0 : i32
    return %c0_i32, %arg1 : i32, i32
  }
  func.func @transform_3(%arg0: i32, %arg1: i32) -> (i32, i32) {
    %c0_i32 = arith.constant 0 : i32
    return %arg0, %arg1 : i32, i32
  }
}

</mosaic_0001>

<llo_original>
// kernel: tpu_custom_call.1
$region0: #{tpu_custom_call.1}
  #allocation0 [shape = 'u32[]', space=smem, size = 0x4, offset = 0x4, fixed_abs, tag = 'smem constant byte address 0x4 - core index']
  #allocation1 [shape = 'u32[144,128]{1,0:T(1,128)}', space=vmem, size = 0x12000, scoped, tag = 'internal scratch']
  %s0 = inlined_call_operand.hbm [shape: bf16[16,64], index: 0, kind: input, shape index: {}]
  %s1 = inlined_call_operand.hbm [shape: bf16[64,128], index: 1, kind: input, shape index: {}]
  %s2 = inlined_call_operand.hbm [shape: f32[1,128], index: 2, kind: input, shape index: {}]
  %s3 = inlined_call_operand.hbm [shape: bf16[16,128], index: 3, kind: output, shape index: {}]
  %s4 = sld [smem:[#allocation0]]
  $region34: #{tpu_custom_call.1} parent=0
    _
  %s6 = ssub.s32 1, %s4
  %s7 = scalar_select 0, %s6, %s4
  $region1: #{tpu_custom_call.1} parent=0
    #allocation2 [shape = 'u8[4096]{0}', space=vmem, size = 0x1000, scoped, tag = 'input window, operand 0, single buffered']
    #allocation3 [shape = 's32[1]{0}', space=sflag, size = 0x4, scoped, tag = 'scoped memory for tpu_custom_call.1']
    #allocation4 [shape = 's32[1]{0}', space=sflag, size = 0x4, scoped, tag = 'scoped memory for tpu_custom_call.1']
    #allocation5 [shape = 'u8[16384]{0}', space=vmem, size = 0x4000, scoped, tag = 'input window, operand 1, single buffered']
    #allocation6 [shape = 's32[1]{0}', space=sflag, size = 0x4, scoped, tag = 'scoped memory for tpu_custom_call.1']
    #allocation7 [shape = 'u8[512]{0}', space=vmem, size = 0x400, scoped, tag = 'input window, operand 2, single buffered']
    #allocation8 [shape = 'u8[4096]{0}', space=vmem, size = 0x1000, scoped, tag = 'output window, operand 0, single buffered']
    %8 = vsyncpa [#allocation3], 0
    %9 = vsyncpa [#allocation6], 0
    %10 = vsyncpa [#allocation4], 0
    // Predicated region
    $region2: #{tpu_custom_call.1} parent=1 // pred_check
      _
    $region3: #{tpu_custom_call.1} parent=1 // pred_check_branch
      %12 = sbr.rel (0) target = $region5
    $region4: #{tpu_custom_call.1} parent=1 // pred_region
      %s14 = ssub.s32 128, 128
      %15 = vsyncadd [#allocation3], %s14
      %s16 = sshll.u32 [#allocation2], 4
      %s17 = int_to_ptr.vmem [resolvable:$true] %s16
      %22 = dma.hbm_to_vmem [thread:$0]  %s0, 128, %s17, [#allocation3], 64, 64, 4
    $region5: #{tpu_custom_call.1} parent=1 // pred_fallthru
      _
    // Predicated region
    $region6: #{tpu_custom_call.1} parent=1 // pred_check
      _
    $region7: #{tpu_custom_call.1} parent=1 // pred_check_branch
      %24 = sbr.rel (0) target = $region9
    $region8: #{tpu_custom_call.1} parent=1 // pred_region
      %s26 = ssub.s32 512, 512
      %27 = vsyncadd [#allocation6], %s26
      %s28 = sshll.u32 [#allocation5], 4
      %s29 = int_to_ptr.vmem [resolvable:$true] %s28
      %34 = dma.hbm_to_vmem [thread:$0]  %s1, 512, %s29, [#allocation6], 64, 64, 4
    $region9: #{tpu_custom_call.1} parent=1 // pred_fallthru
      _
    // Predicated region
    $region10: #{tpu_custom_call.1} parent=1 // pred_check
      _
    $region11: #{tpu_custom_call.1} parent=1 // pred_check_branch
      %36 = sbr.rel (0) target = $region13
    $region12: #{tpu_custom_call.1} parent=1 // pred_region
      %s38 = ssub.s32 16, 16
      %39 = vsyncadd [#allocation6], %s38
      %s41 = sshll.u32 [#allocation7], 4
      %s42 = int_to_ptr.vmem [resolvable:$true] %s41
      %44 = dma.hbm_to_vmem [thread:$0]  %s2, 16, %s42, [#allocation6]
    $region13: #{tpu_custom_call.1} parent=1 // pred_fallthru
      _
    // Predicated region
    $region14: #{tpu_custom_call.1} parent=1 // pred_check
      _
    $region15: #{tpu_custom_call.1} parent=1 // pred_check_branch
      %46 = sbr.rel (0) target = $region17
    $region16: #{tpu_custom_call.1} parent=1 // pred_region
      %47 = dma.done [#allocation3], 128
    $region17: #{tpu_custom_call.1} parent=1 // pred_fallthru
      _
    // Predicated region
    $region18: #{tpu_custom_call.1} parent=1 // pred_check
      _
    $region19: #{tpu_custom_call.1} parent=1 // pred_check_branch
      %49 = sbr.rel (0) target = $region21
    $region20: #{tpu_custom_call.1} parent=1 // pred_region
      %50 = dma.done [#allocation6], 512
    $region21: #{tpu_custom_call.1} parent=1 // pred_fallthru
      _
    // Predicated region
    $region22: #{tpu_custom_call.1} parent=1 // pred_check
      _
    $region23: #{tpu_custom_call.1} parent=1 // pred_check_branch
      %52 = sbr.rel (0) target = $region25
    $region24: #{tpu_custom_call.1} parent=1 // pred_region
      %53 = dma.done [#allocation6], 16
    $region25: #{tpu_custom_call.1} parent=1 // pred_fallthru
      _
    %v55 = vld [vmem:[#allocation2] sm:$0xf]
    %v56 = vld [vmem:[#allocation2 + $0x4] sm:$0xf]
    %v57 = vld [vmem:[#allocation5] sm:$0xf]
    %v58 = vld [vmem:[#allocation5 + $0x4] sm:$0xf]
    %v59 = vld [vmem:[#allocation5 + $0x8] sm:$0xf]
    %v60 = vld [vmem:[#allocation5 + $0xc] sm:$0xf]
    %v61 = vld [vmem:[#allocation5 + $0x10] sm:$0xf]
    %v62 = vld [vmem:[#allocation5 + $0x14] sm:$0xf]
    %v63 = vld [vmem:[#allocation5 + $0x18] sm:$0xf]
    %v64 = vld [vmem:[#allocation5 + $0x1c] sm:$0xf]
    %v65 = vld [vmem:[#allocation7] sm:$0x1]
    %v67 = vlaneseq
    %v68 = vshrl.u32 %v67, 7
    %v69 = vsub.s32 0, %v68
    %v70 = vrot.slane %v65, %v69
    %v74 = vunpack.c.l.b16 %v55
    %v75 = vunpack.c.l.b16 %v56
    %v76 = vpack.c.b16 %v75, %v74
    %v85 = vunpack.c.l.b16 %v57
    %v86 = vunpack.c.l.b16 %v58
    %v87 = vunpack.c.l.b16 %v59
    %v88 = vunpack.c.l.b16 %v60
    %v89 = vunpack.c.l.b16 %v61
    %v90 = vunpack.c.l.b16 %v62
    %v91 = vunpack.c.l.b16 %v63
    %v92 = vunpack.c.l.b16 %v64
    %v93 = vpack.c.b16 %v86, %v85
    %v94 = vpack.c.b16 %v88, %v87
    %v95 = vpack.c.b16 %v90, %v89
    %v96 = vpack.c.b16 %v92, %v91
    %vm101 = vcmask 523264
    %v103 = vsel %vm101, %v76, 0
    %105 = vmatprep.subr.bf16.mxu0 0
    %106 = vmatpush1.bf16.msra.mxu0 %v93
    %107 = vmatprep.subr.bf16.mxu0 0
    %108 = vmatpush1.bf16.msra.mxu0 %v94
    %109 = vmatprep.subr.bf16.mxu0 0
    %110 = vmatpush1.bf16.msra.mxu0 %v95
    %111 = vmatprep.subr.bf16.mxu0 0
    %112 = vmatpush1.bf16.msra.mxu0 %v96
    %113 = vmatprep.subr.bf16.mxu0 0
    %114 = vmatpush1.bf16.msra.mxu0 0
    %115 = vmatprep.subr.bf16.mxu0 0
    %116 = vmatpush1.bf16.msra.mxu0 0
    %117 = vmatprep.subr.bf16.mxu0 0
    %118 = vmatpush1.bf16.msra.mxu0 0
    %119 = vmatprep.subr.bf16.mxu0 0
    %120 = vmatpush1.bf16.msra.mxu0 0
    %121 = vmatprep.subr.bf16.mxu0 0
    %122 = vmatpush1.bf16.msra.mxu0 0
    %123 = vmatprep.subr.bf16.mxu0 0
    %124 = vmatpush1.bf16.msra.mxu0 0
    %125 = vmatprep.subr.bf16.mxu0 0
    %126 = vmatpush1.bf16.msra.mxu0 0
    %127 = vmatprep.subr.bf16.mxu0 0
    %128 = vmatpush1.bf16.msra.mxu0 0
    %129 = vmatprep.subr.bf16.mxu0 0
    %130 = vmatpush1.bf16.msra.mxu0 0
    %131 = vmatprep.subr.bf16.mxu0 0
    %132 = vmatpush1.bf16.msra.mxu0 0
    %133 = vmatprep.subr.bf16.mxu0 0
    %134 = vmatpush1.bf16.msra.mxu0 0
    %135 = vmatprep.subr.bf16.mxu0 0
    %136 = vmatpush1.bf16.msra.mxu0 0
    %137 = vmatprep.mubr.bf16.mxu0 0
    %138 = vmatmul.mubr.bf16.gmra.mrb[0].mxu0 %v103
    %v139 = vpop.f32.mrb[0].mxu0
    %v140 = vadd.f32 %v70, %v139
    %v141 = vpop.f32.mrb[0].mxu0
    %v142 = vpop.f32.mrb[0].mxu0
    %v143 = vadd.f32 %v70, %v142
    %v144 = vpop.f32.mrb[0].mxu0
    %145 = vdwg.mxu0
    %v146 = vmax.f32 %v140, 0.0
    %v147 = vmax.f32 %v143, 0.0
    %v148 = vpack.c.bf16 %v147, %v146
    %v150 = vunpack.c.l.b16 %v148
    %v151 = vunpack.c.h.b16 %v148
    %v152 = vpack.c.b16 %v150, %v150
    %v153 = vpack.c.b16 %v151, %v151
    %156 = vst [vmem:[#allocation8] sm:$0xf] %v152
    %157 = vst [vmem:[#allocation8 + $0x4] sm:$0xf] %v153
    // Predicated region
    $region26: #{tpu_custom_call.1} parent=1 // pred_check
      _
    $region27: #{tpu_custom_call.1} parent=1 // pred_check_branch
      %159 = sbr.rel (0) target = $region29
    $region28: #{tpu_custom_call.1} parent=1 // pred_region
      %s161 = ssub.s32 128, 128
      %162 = vsyncadd [#allocation4], %s161
      %s163 = sshll.u32 [#allocation8], 4
      %s164 = int_to_ptr.vmem [resolvable:$true] %s163
      %169 = dma.vmem_to_hbm [thread:$0]  %s164, 128, %s3, [#allocation4], 64, 64, 4
    $region29: #{tpu_custom_call.1} parent=1 // pred_fallthru
      _
    // Predicated region
    $region30: #{tpu_custom_call.1} parent=1 // pred_check
      _
    $region31: #{tpu_custom_call.1} parent=1 // pred_check_branch
      %171 = sbr.rel (0) target = $region33
    $region32: #{tpu_custom_call.1} parent=1 // pred_region
      %172 = dma.done [#allocation4], 128
    $region33: #{tpu_custom_call.1} parent=1 // pred_fallthru
      _
    %173 = vsyncpa [#allocation3], 1
    %174 = vsyncpa [#allocation6], 1
    %175 = vsyncpa [#allocation4], 1

</llo_original>
